<compile_context>
chip_gen: v7x
topology: tpu7x:2x2x1
jax: 0.10.0
libtpu: 0.0.40
codegen_flags: <defaults>
</compile_context>

<pallas_src>
import jax
import jax.numpy as jnp
from jax.experimental import pallas as pl
from jax.experimental.pallas import tpu as pltpu


# ----------------------------- config (small, synthetic) --------------------
HIDDEN_SIZE = 32          # config.hidden_size
EMBEDDING_SIZE = 24       # config.embedding_size (!= hidden_size -> projection)
VOCAB_SIZE = 128          # config.vocab_size
POS_EMB_SIZE = 16         # position_embedding_size
MAX_SPAN_LEN = 4          # max_span_len
BS = 2
NUM_PAIRS = 4
SEQ_LEN = 8
LN_EPS = 1e-12

# Output dtype flag: bf16 halves the (dominant at scale) logit HBM store.
# Set to jnp.float32 for exact-PyTorch output dtype.
LOGITS_DTYPE = jnp.bfloat16


def _round_up(x, m):
    return (x + m - 1) // m * m


# Padded feature widths, derived from config (not hardcoded).
H_PAD = _round_up(HIDDEN_SIZE, 128)                       # lane-dense hidden width
# Embedding / decoder-contraction dim: only pad to the bf16 sublane multiple
# (24 -> 32); for configs with E >= 128 pad to a lane-dense multiple of 128.
E_PAD = (_round_up(EMBEDDING_SIZE, 128) if EMBEDDING_SIZE >= 128
         else _round_up(EMBEDDING_SIZE, 16))


# ----------------------------- math helpers ---------------------------------
def _gelu_exact(x):
    # matches torch.nn.functional.gelu (erf formulation) used by get_activation("gelu")
    return 0.5 * x * (1.0 + jax.lax.erf(x * jnp.asarray(0.7071067811865476, x.dtype)))


def _layer_norm_padded(x, gamma, beta, real_width):
    # x columns >= real_width are exact zeros, so sums over the padded width
    # equal sums over the real width; divide by real_width, not the padded one.
    # gamma/beta are zero-padded, so padded output columns stay exactly zero.
    # Variance is clamped at 0: E[x^2] - mean^2 in f32 can go slightly negative.
    inv_n = jnp.asarray(1.0 / real_width, x.dtype)
    mean = jnp.sum(x, axis=-1, keepdims=True) * inv_n
    var = jnp.sum(x * x, axis=-1, keepdims=True) * inv_n - mean * mean
    var = jnp.maximum(var, 0.0)
    return (x - mean) * jax.lax.rsqrt(var + LN_EPS) * gamma + beta


def _mlp_math(x1, vec, bp, w2, wp):
    """gelu -> LN1 -> linear2 -> gelu -> LN2 -> embeddings_project (all f32 math,
    bf16 matmul operands with f32 accumulation).

    x1:  (rows, H_PAD) f32 linear1 pre-activation (padded cols are zero).
    vec: (8, H_PAD) f32 packed small params (gamma1, beta1, b2, gamma2, beta2).
    bp:  (8, E_PAD) f32, row 0 = projection bias.
    w2:  (H_PAD, H_PAD) bf16, wp: (H_PAD, E_PAD) bf16.
    Returns (rows, E_PAD) f32.
    """
    g1, bt1, b2, g2, bt2 = vec[0:1], vec[1:2], vec[2:3], vec[3:4], vec[4:5]
    h = _gelu_exact(x1)
    h = _layer_norm_padded(h, g1, bt1, HIDDEN_SIZE)
    h = jnp.dot(h.astype(jnp.bfloat16), w2, preferred_element_type=jnp.float32) + b2
    h = _gelu_exact(h)
    h = _layer_norm_padded(h, g2, bt2, HIDDEN_SIZE)
    h = jnp.dot(h.astype(jnp.bfloat16), wp, preferred_element_type=jnp.float32) + bp[0:1]
    return h


# ----------------------------- Pallas kernels --------------------------------
def _mlp_kernel(x_ref, vec_ref, bp_ref, w2_ref, wp_ref, h_ref):
    # Cast once to bf16 on store: kernel B then streams a half-size h and does
    # no per-vocab-step casts.
    h_ref[...] = _mlp_math(x_ref[...], vec_ref[...], bp_ref[...],
                           w2_ref[...], wp_ref[...]).astype(jnp.bfloat16)


def _decoder_kernel(h_ref, wd_ref, o_ref):
    o_ref[...] = jnp.dot(h_ref[...], wd_ref[...],
                         preferred_element_type=jnp.float32).astype(o_ref.dtype)


# ----------------------------- tiling heuristics -----------------------------
def _is_v5e():
    try:
        return "v5" in jax.devices()[0].device_kind.lower()
    except Exception:  # pragma: no cover
        return False


def _choose_row_tile(n_rows):
    # v6e/v7x MXU is 256-wide -> M=256 fills it; v5e MXU is 128-wide.
    big = 128 if _is_v5e() else 256
    if n_rows >= 2 * big:
        return big              # >= 2 row tiles: row axis stays megacore-splittable
    if n_rows >= 256:
        return 128
    # tiny problems: keep >= 2 row tiles, multiple of 16 (bf16 sublane tile)
    return max(16, _round_up(_round_up(n_rows, 32) // 2, 16))


def _choose_vocab_tiling(vocab):
    # Always use a fat, lane-dense vocab tile (up to 2048); pad the vocab dim of
    # wd / logits up to a multiple of it in the wrapper and slice afterwards.
    tile_v = 2048 if vocab >= 2048 else _round_up(vocab, 128)
    return tile_v, _round_up(vocab, tile_v)


# ----------------------------- pallas_call wrappers ---------------------------
def _run_mlp_kernel(x1_pad, vec, bp, w2, wp, tile_rows):
    padded_rows = x1_pad.shape[0]
    grid = (padded_rows // tile_rows,)
    return pl.pallas_call(
        _mlp_kernel,
        out_shape=jax.ShapeDtypeStruct((padded_rows, E_PAD), jnp.bfloat16),
        grid=grid,
        in_specs=[
            pl.BlockSpec((tile_rows, H_PAD), lambda i: (i, 0)),   # linear1 pre-act
            pl.BlockSpec((8, H_PAD), lambda i: (0, 0)),           # packed LN/bias vecs
            pl.BlockSpec((8, E_PAD), lambda i: (0, 0)),           # projection bias
            pl.BlockSpec((H_PAD, H_PAD), lambda i: (0, 0)),       # w2 (bf16)
            pl.BlockSpec((H_PAD, E_PAD), lambda i: (0, 0)),       # wp (bf16)
        ],
        out_specs=pl.BlockSpec((tile_rows, E_PAD), lambda i: (i, 0)),
        compiler_params=pltpu.CompilerParams(dimension_semantics=("parallel",)),
    )(x1_pad, vec, bp, w2, wp)


def _run_decoder_kernel(h_all, wd, tile_rows, tile_v):
    padded_rows = h_all.shape[0]
    v_pad = wd.shape[1]
    # Vocab axis OUTER, rows INNER: wd's block index only changes on the outer
    # axis, so each wd tile is DMA'd exactly once per forward (not per row tile).
    grid = (v_pad // tile_v, padded_rows // tile_rows)
    return pl.pallas_call(
        _decoder_kernel,
        out_shape=jax.ShapeDtypeStruct((padded_rows, v_pad), LOGITS_DTYPE),
        grid=grid,
        in_specs=[
            pl.BlockSpec((tile_rows, E_PAD), lambda v, i: (i, 0)),   # h (bf16)
            pl.BlockSpec((E_PAD, tile_v), lambda v, i: (0, v)),      # decoder weight (bf16)
        ],
        out_specs=pl.BlockSpec((tile_rows, tile_v), lambda v, i: (i, v)),
        compiler_params=pltpu.CompilerParams(
            dimension_semantics=("parallel", "parallel")),
    )(h_all, wd)


# ----------------------------- param prep (padding / bf16) ------------------
def _pad2(a, rows, cols, dtype):
    out = jnp.zeros((rows, cols), dtype)
    return out.at[:a.shape[0], :a.shape[1]].set(a.astype(dtype))


def _prepare_padded_params(params, v_pad):
    H, E = HIDDEN_SIZE, EMBEDDING_SIZE
    vec = jnp.zeros((8, H_PAD), jnp.float32)
    vec = vec.at[0, :H].set(params["gamma1"])
    vec = vec.at[1, :H].set(params["beta1"])
    vec = vec.at[2, :H].set(params["b2"])
    vec = vec.at[3, :H].set(params["gamma2"])
    vec = vec.at[4, :H].set(params["beta2"])
    bp = jnp.zeros((8, E_PAD), jnp.float32).at[0, :E].set(params["bp"])
    w2 = _pad2(params["w2"], H_PAD, H_PAD, jnp.bfloat16)
    wp = _pad2(params["wp"], H_PAD, E_PAD, jnp.bfloat16)
    wd = _pad2(params["wd"], E_PAD, v_pad, jnp.bfloat16)
    return vec, bp, w2, wp, wd


def _linear1_preactivation(hidden_states, pairs, params):
    """Hoisted linear1: project pair hiddens once per (bs,pair), positions once
    per span slot, broadcast-add.  Returns (bs*num_pairs*L, H) f32."""
    bs, _, dim = hidden_states.shape
    _, num_pairs, _ = pairs.shape
    H, L = HIDDEN_SIZE, MAX_SPAN_LEN

    left = pairs[:, :, 0]
    right = pairs[:, :, 1]
    lh = jnp.take_along_axis(hidden_states, left[:, :, None], axis=1)    # (bs, np, H)
    rh = jnp.take_along_axis(hidden_states, right[:, :, None], axis=1)   # (bs, np, H)
    bn = bs * num_pairs
    lh = lh.reshape(bn, dim)
    rh = rh.reshape(bn, dim)

    w1 = params["w1"]                                                    # (2H+P, H)
    pair_pre = lh @ w1[:H] + rh @ w1[H:2 * H]                            # (bn, H)
    pos_pre = params["pos_emb"] @ w1[2 * H:] + params["b1"]              # (L, H)
    x1 = pair_pre[:, None, :] + pos_pre[None, :, :]                      # (bn, L, H)
    return x1.reshape(bn * L, H)


# ----------------------------- wrapper ---------------------------------------
@jax.jit
def span_electra_generator_prediction_head(hidden_states, pairs, params):
    """hidden_states: (bs, seq_len, hidden), pairs: (bs, num_pairs, 2) int32.
    Returns target_scores: (bs * num_pairs, max_span_len, vocab_size)."""
    bs, _, dim = hidden_states.shape
    _, num_pairs, two = pairs.shape
    assert two == 2 and dim == HIDDEN_SIZE

    x1 = _linear1_preactivation(hidden_states, pairs, params)           # (rows, H) f32
    n_rows = x1.shape[0]

    tile_rows = _choose_row_tile(n_rows)
    padded_rows = _round_up(n_rows, tile_rows)
    x1_pad = jnp.zeros((padded_rows, H_PAD), jnp.float32)
    x1_pad = x1_pad.at[:n_rows, :HIDDEN_SIZE].set(x1)

    tile_v, v_pad = _choose_vocab_tiling(VOCAB_SIZE)
    vec, bp, w2, wp, wd = _prepare_padded_params(params, v_pad)

    h_all = _run_mlp_kernel(x1_pad, vec, bp, w2, wp, tile_rows)         # (rows_pad, E_PAD) bf16
    scores = _run_decoder_kernel(h_all, wd, tile_rows, tile_v)          # (rows_pad, v_pad)
    scores = scores[:n_rows, :VOCAB_SIZE]
    return scores.reshape(bs * num_pairs, MAX_SPAN_LEN, VOCAB_SIZE)


# ----------------------------- references ------------------------------------
def reference_forward_matched(hidden_states, pairs, params):
    """Same padded / bf16-matmul / bf16-h / LOGITS_DTYPE math as the kernels,
    in plain jnp (tight check)."""
    x1 = _linear1_preactivation(hidden_states, pairs, params)
    n_rows = x1.shape[0]
    x1_pad = jnp.zeros((n_rows, H_PAD), jnp.float32).at[:, :HIDDEN_SIZE].set(x1)
    _, v_pad = _choose_vocab_tiling(VOCAB_SIZE)
    vec, bp, w2, wp, wd = _prepare_padded_params(params, v_pad)
    h = _mlp_math(x1_pad, vec, bp, w2, wp).astype(jnp.bfloat16)
    scores = jnp.dot(h, wd, preferred_element_type=jnp.float32).astype(LOGITS_DTYPE)
    return scores[:, :VOCAB_SIZE].reshape(-1, MAX_SPAN_LEN, VOCAB_SIZE)


def _layer_norm_exact(x, gamma, beta):
    mean = jnp.mean(x, axis=-1, keepdims=True)
    var = jnp.mean(jnp.square(x - mean), axis=-1, keepdims=True)
    return (x - mean) * jax.lax.rsqrt(var + LN_EPS) * gamma + beta


def reference_forward_f32(hidden_states, pairs, params):
    """Exact PyTorch-semantics path, all f32 (loose sanity check vs bf16 kernel)."""
    bs, _, dim = hidden_states.shape
    _, num_pairs, _ = pairs.shape
    L, P = MAX_SPAN_LEN, POS_EMB_SIZE
    left = pairs[:, :, 0]
    right = pairs[:, :, 1]
    lh = jnp.take_along_axis(hidden_states, left[:, :, None], axis=1)
    rh = jnp.take_along_axis(hidden_states, right[:, :, None], axis=1)
    bn = bs * num_pairs
    lh = jnp.broadcast_to(lh.reshape(bn, 1, dim), (bn, L, dim))
    rh = jnp.broadcast_to(rh.reshape(bn, 1, dim), (bn, L, dim))
    pos = jnp.broadcast_to(params["pos_emb"][None], (bn, L, P))
    x = jnp.concatenate((lh, rh, pos), -1)
    h = _layer_norm_exact(_gelu_exact(x @ params["w1"] + params["b1"]),
                          params["gamma1"], params["beta1"])
    h = _layer_norm_exact(_gelu_exact(h @ params["w2"] + params["b2"]),
                          params["gamma2"], params["beta2"])
    h = h @ params["wp"] + params["bp"]
    return h @ params["wd"]


# ----------------------------- parameter init --------------------------------
def init_params(key):
    H, E, V, P = HIDDEN_SIZE, EMBEDDING_SIZE, VOCAB_SIZE, POS_EMB_SIZE
    in_dim = 2 * H + P
    ks = jax.random.split(key, 8)
    f32 = jnp.float32

    emb_weights = 0.02 * jax.random.normal(ks[0], (V, E), f32)   # tied decoder weight
    return {
        "pos_emb": 0.02 * jax.random.normal(ks[1], (MAX_SPAN_LEN, P), f32),
        "w1": 0.05 * jax.random.normal(ks[2], (in_dim, H), f32),
        "b1": jnp.zeros((H,), f32),
        "gamma1": jnp.ones((H,), f32),
        "beta1": jnp.zeros((H,), f32),
        "w2": 0.05 * jax.random.normal(ks[3], (H, H), f32),
        "b2": jnp.zeros((H,), f32),
        "gamma2": jnp.ones((H,), f32),
        "beta2": jnp.zeros((H,), f32),
        "wp": 0.05 * jax.random.normal(ks[4], (H, E), f32),
        "bp": jnp.zeros((E,), f32),
        "wd": emb_weights.T,                                     # (E, V)
    }


if __name__ == "__main__":
    key = jax.random.PRNGKey(0)
    k_hs, k_pairs, k_params = jax.random.split(key, 3)

    hidden_states = jax.random.normal(k_hs, (BS, SEQ_LEN, HIDDEN_SIZE), jnp.float32)
    pairs = jax.random.randint(k_pairs, (BS, NUM_PAIRS, 2), 0, SEQ_LEN, jnp.int32)
    params = init_params(k_params)

    out = span_electra_generator_prediction_head(hidden_states, pairs, params)
    out = jax.block_until_ready(out)
    assert out.shape == (BS * NUM_PAIRS, MAX_SPAN_LEN, VOCAB_SIZE)
    out_f32 = jnp.asarray(out, jnp.float32)

    # Tight check against a reference using the same padding / bf16 math.
    ref_tight = jnp.asarray(reference_forward_matched(hidden_states, pairs, params),
                            jnp.float32)
    assert jnp.allclose(out_f32, ref_tight, atol=5e-4, rtol=5e-3), \
        "mismatch vs matched-precision reference"

    # Loose sanity check against the exact f32 PyTorch-semantics reference
    # (difference comes only from bf16 matmul operands / bf16 logits).
    ref_exact = reference_forward_f32(hidden_states, pairs, params)
    assert jnp.allclose(out_f32, ref_exact, atol=5e-3, rtol=5e-2), \
        "mismatch vs exact f32 reference"

    print("KERNEL_OK")
</pallas_src>

<mosaic_0001>
module attributes {stable_mosaic.version = 11 : i64} {
  func.func @_mlp_kernel(%arg0: i32, %arg1: memref<16x128xf32, #tpu.memory_space<vmem>>, %arg2: memref<8x128xf32, #tpu.memory_space<vmem>>, %arg3: memref<8x32xf32, #tpu.memory_space<vmem>>, %arg4: memref<128x128xbf16, #tpu.memory_space<vmem>>, %arg5: memref<128x32xbf16, #tpu.memory_space<vmem>>, %arg6: memref<16x32xbf16, #tpu.memory_space<vmem>>) attributes {dimension_semantics = [#tpu.dimension_semantics<parallel>], iteration_bounds = array<i64: 2>, scalar_prefetch = 0 : i64, scratch_operands = 0 : i64, tpu.core_type = #tpu.core_type<tc>, window_params = [{transform_indices = @transform_0, window_bounds = array<i64: 16, 128>}, {pipeline_mode = #tpu.pipeline_mode<synchronous>, transform_indices = @transform_1, window_bounds = array<i64: 8, 128>}, {pipeline_mode = #tpu.pipeline_mode<synchronous>, transform_indices = @transform_2, window_bounds = array<i64: 8, 32>}, {pipeline_mode = #tpu.pipeline_mode<synchronous>, transform_indices = @transform_3, window_bounds = array<i64: 128, 128>}, {pipeline_mode = #tpu.pipeline_mode<synchronous>, transform_indices = @transform_4, window_bounds = array<i64: 128, 32>}, {transform_indices = @transform_5, window_bounds = array<i64: 16, 32>}]} {
    %c0 = arith.constant 0 : index
    %c0_0 = arith.constant 0 : index
    %0 = vector.load %arg1[%c0, %c0_0] : memref<16x128xf32, #tpu.memory_space<vmem>>, vector<16x128xf32>
    %c0_1 = arith.constant 0 : index
    %c0_2 = arith.constant 0 : index
    %1 = vector.load %arg2[%c0_1, %c0_2] : memref<8x128xf32, #tpu.memory_space<vmem>>, vector<8x128xf32>
    %c0_3 = arith.constant 0 : index
    %c0_4 = arith.constant 0 : index
    %2 = vector.load %arg3[%c0_3, %c0_4] : memref<8x32xf32, #tpu.memory_space<vmem>>, vector<8x32xf32>
    %c0_5 = arith.constant 0 : index
    %c0_6 = arith.constant 0 : index
    %3 = vector.load %arg4[%c0_5, %c0_6] : memref<128x128xbf16, #tpu.memory_space<vmem>>, vector<128x128xbf16>
    %c0_7 = arith.constant 0 : index
    %c0_8 = arith.constant 0 : index
    %4 = vector.load %arg5[%c0_7, %c0_8] : memref<128x32xbf16, #tpu.memory_space<vmem>>, vector<128x32xbf16>
    %5 = vector.extract_strided_slice %1 {offsets = [0, 0], sizes = [1, 128], strides = [1, 1]} : vector<8x128xf32> to vector<1x128xf32>
    %6 = vector.extract_strided_slice %1 {offsets = [1, 0], sizes = [1, 128], strides = [1, 1]} : vector<8x128xf32> to vector<1x128xf32>
    %7 = vector.extract_strided_slice %1 {offsets = [2, 0], sizes = [1, 128], strides = [1, 1]} : vector<8x128xf32> to vector<1x128xf32>
    %8 = vector.extract_strided_slice %1 {offsets = [3, 0], sizes = [1, 128], strides = [1, 1]} : vector<8x128xf32> to vector<1x128xf32>
    %9 = vector.extract_strided_slice %1 {offsets = [4, 0], sizes = [1, 128], strides = [1, 1]} : vector<8x128xf32> to vector<1x128xf32>
    %cst = arith.constant 5.000000e-01 : f32
    %10 = vector.broadcast %cst : f32 to vector<16x128xf32>
    %11 = arith.mulf %10, %0 : vector<16x128xf32>
    %cst_9 = arith.constant 0.707106769 : f32
    %12 = vector.broadcast %cst_9 : f32 to vector<16x128xf32>
    %13 = arith.mulf %0, %12 : vector<16x128xf32>
    %14 = math.erf %13 : vector<16x128xf32>
    %cst_10 = arith.constant 1.000000e+00 : f32
    %15 = vector.broadcast %cst_10 : f32 to vector<16x128xf32>
    %16 = arith.addf %15, %14 : vector<16x128xf32>
    %17 = arith.mulf %11, %16 : vector<16x128xf32>
    %cst_11 = arith.constant dense<0.000000e+00> : vector<16xf32>
    %18 = vector.multi_reduction <add>, %17, %cst_11 [1] : vector<16x128xf32> to vector<16xf32>
    %19 = vector.shape_cast %18 : vector<16xf32> to vector<16x1xf32>
    %cst_12 = arith.constant 3.125000e-02 : f32
    %20 = vector.broadcast %cst_12 : f32 to vector<16x1xf32>
    %21 = arith.mulf %19, %20 : vector<16x1xf32>
    %22 = arith.mulf %17, %17 : vector<16x128xf32>
    %cst_13 = arith.constant dense<0.000000e+00> : vector<16xf32>
    %23 = vector.multi_reduction <add>, %22, %cst_13 [1] : vector<16x128xf32> to vector<16xf32>
    %24 = vector.shape_cast %23 : vector<16xf32> to vector<16x1xf32>
    %cst_14 = arith.constant 3.125000e-02 : f32
    %25 = vector.broadcast %cst_14 : f32 to vector<16x1xf32>
    %26 = arith.mulf %24, %25 : vector<16x1xf32>
    %27 = arith.mulf %21, %21 : vector<16x1xf32>
    %28 = arith.subf %26, %27 : vector<16x1xf32>
    %cst_15 = arith.constant 0.000000e+00 : f32
    %29 = vector.broadcast %cst_15 : f32 to vector<16x1xf32>
    %30 = arith.maximumf %28, %29 : vector<16x1xf32>
    %31 = vector.broadcast %21 : vector<16x1xf32> to vector<16x128xf32>
    %32 = arith.subf %17, %31 : vector<16x128xf32>
    %cst_16 = arith.constant 9.99999996E-13 : f32
    %33 = vector.broadcast %cst_16 : f32 to vector<16x1xf32>
    %34 = arith.addf %30, %33 : vector<16x1xf32>
    %35 = math.rsqrt %34 : vector<16x1xf32>
    %36 = vector.broadcast %35 : vector<16x1xf32> to vector<16x128xf32>
    %37 = arith.mulf %32, %36 : vector<16x128xf32>
    %38 = vector.broadcast %5 : vector<1x128xf32> to vector<16x128xf32>
    %39 = arith.mulf %37, %38 : vector<16x128xf32>
    %40 = vector.broadcast %6 : vector<1x128xf32> to vector<16x128xf32>
    %41 = arith.addf %39, %40 : vector<16x128xf32>
    %42 = arith.truncf %41 : vector<16x128xf32> to vector<16x128xbf16>
    %cst_17 = arith.constant dense<0.000000e+00> : vector<16x128xf32>
    %43 = tpu.matmul %42, %3, %cst_17 {dimension_numbers = #tpu.dot_dimension_numbers<[1], [0], [0], [1], [0, 0, 1, 1], [], []>} : vector<16x128xbf16>, vector<128x128xbf16>, vector<16x128xf32> -> vector<16x128xf32>
    %44 = vector.broadcast %7 : vector<1x128xf32> to vector<16x128xf32>
    %45 = arith.addf %43, %44 : vector<16x128xf32>
    %cst_18 = arith.constant 5.000000e-01 : f32
    %46 = vector.broadcast %cst_18 : f32 to vector<16x128xf32>
    %47 = arith.mulf %46, %45 : vector<16x128xf32>
    %cst_19 = arith.constant 0.707106769 : f32
    %48 = vector.broadcast %cst_19 : f32 to vector<16x128xf32>
    %49 = arith.mulf %45, %48 : vector<16x128xf32>
    %50 = math.erf %49 : vector<16x128xf32>
    %cst_20 = arith.constant 1.000000e+00 : f32
    %51 = vector.broadcast %cst_20 : f32 to vector<16x128xf32>
    %52 = arith.addf %51, %50 : vector<16x128xf32>
    %53 = arith.mulf %47, %52 : vector<16x128xf32>
    %cst_21 = arith.constant dense<0.000000e+00> : vector<16xf32>
    %54 = vector.multi_reduction <add>, %53, %cst_21 [1] : vector<16x128xf32> to vector<16xf32>
    %55 = vector.shape_cast %54 : vector<16xf32> to vector<16x1xf32>
    %cst_22 = arith.constant 3.125000e-02 : f32
    %56 = vector.broadcast %cst_22 : f32 to vector<16x1xf32>
    %57 = arith.mulf %55, %56 : vector<16x1xf32>
    %58 = arith.mulf %53, %53 : vector<16x128xf32>
    %cst_23 = arith.constant dense<0.000000e+00> : vector<16xf32>
    %59 = vector.multi_reduction <add>, %58, %cst_23 [1] : vector<16x128xf32> to vector<16xf32>
    %60 = vector.shape_cast %59 : vector<16xf32> to vector<16x1xf32>
    %cst_24 = arith.constant 3.125000e-02 : f32
    %61 = vector.broadcast %cst_24 : f32 to vector<16x1xf32>
    %62 = arith.mulf %60, %61 : vector<16x1xf32>
    %63 = arith.mulf %57, %57 : vector<16x1xf32>
    %64 = arith.subf %62, %63 : vector<16x1xf32>
    %cst_25 = arith.constant 0.000000e+00 : f32
    %65 = vector.broadcast %cst_25 : f32 to vector<16x1xf32>
    %66 = arith.maximumf %64, %65 : vector<16x1xf32>
    %67 = vector.broadcast %57 : vector<16x1xf32> to vector<16x128xf32>
    %68 = arith.subf %53, %67 : vector<16x128xf32>
    %cst_26 = arith.constant 9.99999996E-13 : f32
    %69 = vector.broadcast %cst_26 : f32 to vector<16x1xf32>
    %70 = arith.addf %66, %69 : vector<16x1xf32>
    %71 = math.rsqrt %70 : vector<16x1xf32>
    %72 = vector.broadcast %71 : vector<16x1xf32> to vector<16x128xf32>
    %73 = arith.mulf %68, %72 : vector<16x128xf32>
    %74 = vector.broadcast %8 : vector<1x128xf32> to vector<16x128xf32>
    %75 = arith.mulf %73, %74 : vector<16x128xf32>
    %76 = vector.broadcast %9 : vector<1x128xf32> to vector<16x128xf32>
    %77 = arith.addf %75, %76 : vector<16x128xf32>
    %78 = arith.truncf %77 : vector<16x128xf32> to vector<16x128xbf16>
    %cst_27 = arith.constant dense<0.000000e+00> : vector<16x32xf32>
    %79 = tpu.matmul %78, %4, %cst_27 {dimension_numbers = #tpu.dot_dimension_numbers<[1], [0], [0], [1], [0, 0, 1, 1], [], []>} : vector<16x128xbf16>, vector<128x32xbf16>, vector<16x32xf32> -> vector<16x32xf32>
    %80 = vector.extract_strided_slice %2 {offsets = [0, 0], sizes = [1, 32], strides = [1, 1]} : vector<8x32xf32> to vector<1x32xf32>
    %81 = vector.broadcast %80 : vector<1x32xf32> to vector<16x32xf32>
    %82 = arith.addf %79, %81 : vector<16x32xf32>
    %83 = arith.truncf %82 : vector<16x32xf32> to vector<16x32xbf16>
    %c0_28 = arith.constant 0 : index
    %c0_29 = arith.constant 0 : index
    %84 = vector.load %arg6[%c0_28, %c0_29] : memref<16x32xbf16, #tpu.memory_space<vmem>>, vector<16x32xbf16>
    tpu.vector_store %arg6[%c0_28, %c0_29], %83 {strides = array<i32>} : memref<16x32xbf16, #tpu.memory_space<vmem>>, vector<16x32xbf16>,
    return
  }
  func.func @transform_0(%arg0: i32) -> (i32, i32) {
    %c0_i32 = arith.constant 0 : i32
    %c0_i32_0 = arith.constant 0 : i32
    return %arg0, %c0_i32 : i32, i32
  }
  func.func @transform_1(%arg0: i32) -> (i32, i32) {
    %c0_i32 = arith.constant 0 : i32
    %c0_i32_0 = arith.constant 0 : i32
    %c0_i32_1 = arith.constant 0 : i32
    return %c0_i32, %c0_i32_0 : i32, i32
  }
  func.func @transform_2(%arg0: i32) -> (i32, i32) {
    %c0_i32 = arith.constant 0 : i32
    %c0_i32_0 = arith.constant 0 : i32
    %c0_i32_1 = arith.constant 0 : i32
    return %c0_i32, %c0_i32_0 : i32, i32
  }
  func.func @transform_3(%arg0: i32) -> (i32, i32) {
    %c0_i32 = arith.constant 0 : i32
    %c0_i32_0 = arith.constant 0 : i32
    %c0_i32_1 = arith.constant 0 : i32
    return %c0_i32, %c0_i32_0 : i32, i32
  }
  func.func @transform_4(%arg0: i32) -> (i32, i32) {
    %c0_i32 = arith.constant 0 : i32
    %c0_i32_0 = arith.constant 0 : i32
    %c0_i32_1 = arith.constant 0 : i32
    return %c0_i32, %c0_i32_0 : i32, i32
  }
  func.func @transform_5(%arg0: i32) -> (i32, i32) {
    %c0_i32 = arith.constant 0 : i32
    %c0_i32_0 = arith.constant 0 : i32
    return %arg0, %c0_i32 : i32, i32
  }
}

module attributes {stable_mosaic.version = 11 : i64} {
  func.func @_decoder_kernel(%arg0: i32, %arg1: i32, %arg2: memref<16x32xbf16, #tpu.memory_space<vmem>>, %arg3: memref<32x128xbf16, #tpu.memory_space<vmem>>, %arg4: memref<16x128xbf16, #tpu.memory_space<vmem>>) attributes {dimension_semantics = [#tpu.dimension_semantics<parallel>, #tpu.dimension_semantics<parallel>], iteration_bounds = array<i64: 1, 2>, scalar_prefetch = 0 : i64, scratch_operands = 0 : i64, tpu.core_type = #tpu.core_type<tc>, window_params = [{transform_indices = @transform_0, window_bounds = array<i64: 16, 32>}, {transform_indices = @transform_1, window_bounds = array<i64: 32, 128>}, {transform_indices = @transform_2, window_bounds = array<i64: 16, 128>}]} {
    %c0 = arith.constant 0 : index
    %c0_0 = arith.constant 0 : index
    %0 = vector.load %arg2[%c0, %c0_0] : memref<16x32xbf16, #tpu.memory_space<vmem>>, vector<16x32xbf16>
    %c0_1 = arith.constant 0 : index
    %c0_2 = arith.constant 0 : index
    %1 = vector.load %arg3[%c0_1, %c0_2] : memref<32x128xbf16, #tpu.memory_space<vmem>>, vector<32x128xbf16>
    %cst = arith.constant dense<0.000000e+00> : vector<16x128xf32>
    %2 = tpu.matmul %0, %1, %cst {dimension_numbers = #tpu.dot_dimension_numbers<[1], [0], [0], [1], [0, 0, 1, 1], [], []>} : vector<16x32xbf16>, vector<32x128xbf16>, vector<16x128xf32> -> vector<16x128xf32>
    %3 = arith.truncf %2 : vector<16x128xf32> to vector<16x128xbf16>
    %c0_3 = arith.constant 0 : index
    %c0_4 = arith.constant 0 : index
    %4 = vector.load %arg4[%c0_3, %c0_4] : memref<16x128xbf16, #tpu.memory_space<vmem>>, vector<16x128xbf16>
    tpu.vector_store %arg4[%c0_3, %c0_4], %3 {strides = array<i32>} : memref<16x128xbf16, #tpu.memory_space<vmem>>, vector<16x128xbf16>,
    return
  }
  func.func @transform_0(%arg0: i32, %arg1: i32) -> (i32, i32) {
    %c0_i32 = arith.constant 0 : i32
    %c0_i32_0 = arith.constant 0 : i32
    return %arg1, %c0_i32 : i32, i32
  }
  func.func @transform_1(%arg0: i32, %arg1: i32) -> (i32, i32) {
    %c0_i32 = arith.constant 0 : i32
    %c0_i32_0 = arith.constant 0 : i32
    return %c0_i32, %arg0 : i32, i32
  }
  func.func @transform_2(%arg0: i32, %arg1: i32) -> (i32, i32) {
    %c0_i32 = arith.constant 0 : i32
    return %arg1, %arg0 : i32, i32
  }
}

</mosaic_0001>

<llo_original>
// kernel: span_electra_generator_prediction_head.3
$region0: #{span_electra_generator_prediction_head.3}
  #allocation0 [shape = 'u32[]', space=smem, size = 0x4, offset = 0x4, fixed_abs, tag = 'smem constant byte address 0x4 - core index']
  #allocation1 [shape = 'u32[144,128]{1,0:T(1,128)}', space=vmem, size = 0x12000, scoped, tag = 'internal scratch']
  %s0 = inlined_call_operand.vmem [shape: bf16[32,32], index: 0, kind: input, shape index: {}]
  %s1 = inlined_call_operand.vmem [shape: bf16[32,128], index: 1, kind: input, shape index: {}]
  %s2 = inlined_call_operand.hbm [shape: bf16[32,128], index: 2, kind: output, shape index: {}]
  %s3 = sld [smem:[#allocation0]]
  $region41: #{span_electra_generator_prediction_head.3} parent=0
    _
  %s5 = ssub.s32 1, %s3
  %s6 = scalar_select 0, %s5, %s3
  $region1: #{span_electra_generator_prediction_head.3} parent=0
    #allocation2 [shape = 'u8[8192]{0}', space=vmem, size = 0x2000, scoped, tag = 'output window, operand 0']
    #allocation3 [shape = 's32[2]{0}', space=sflag, size = 0x8, scoped, tag = 'scoped memory for span_electra_generator_prediction_head.3']
    %7 = vsyncpa [#allocation3], 0
    %s8 = scalar_lea.sflag [#allocation3], 1
    %9 = vsyncpa %s8, 0
    loop: start=0, step=1, limit=4
    $region2: #{span_electra_generator_prediction_head.3} parent=1 // loop_pre_header
      _
    $region3: #{span_electra_generator_prediction_head.3} parent=1 // loop_header
      %s11 = sphi 0, %s15
      %p12 = scmp.ge.s32.totalorder %s11, 4
      %s18 = sphi 0, %s30
      %s19 = sphi 0, %s26
      %s20 = sphi 0, %s18
      %s21 = sphi 0, %s19
      %s22 = sphi 0, %s20
      %s23 = sphi 0, %s21
      %s33 = sphi 0, %s35
      %s36 = sphi 0, %s33
      %s37 = sphi 0, %s36
      %s53 = sphi 0, %s37
      %s59 = sphi 0, %s61
      %s62 = sphi 0, %s59
      %s63 = sphi 0, %s62
      %s79 = sphi 0, %s63
      %s87 = sphi 0, %s89
      %s90 = sphi 0, %s87
      %s91 = sphi 0, %s90
      %s107 = sphi 0, %s91
    $region4: #{span_electra_generator_prediction_head.3} parent=1 // loop_header_branch
      %14 = sbr.rel (%p12) target = $region8
    $region5: #{span_electra_generator_prediction_head.3} parent=1 // loop_body
      %s16 = ssub.s32 %s11, 1
      %s17 = ssub.s32 %s11, 2
      %s24 = sadd.s32 1, %s19
      %p25 = scmp.ge.s32.totalorder %s24, 2
      %s26 = scalar_select %p25, 0, %s24
      %s27 = sadd.s32 1, %s18
      %s28 = scalar_select %p25, %s27, %s18
      %p29 = scmp.ge.s32.totalorder %s28, 1
      %s30 = scalar_select %p29, 0, %s28
      %s31 = ssub.s32 %s19, %s26
      %p32 = scmp.eq.s32.totalorder %s31, 0
      %s34 = sadd.s32 %s33, 1
      %s35 = scalar_select %p32, %s33, %s34
      %p38 = pneg %p32
      %p39 = scmp.eq.s32.totalorder %s11, 1
      %p40 = por %p38, %p39
      %p41 = scmp.ne.s32.totalorder %s33, %s36
      %p42 = scmp.eq.s32.totalorder %s11, 0
      %p43 = por %p41, %p42
      %p44 = scmp.ne.s32.totalorder %s33, %s36
      %p45 = scmp.eq.s32.totalorder %s16, 1
      %p46 = por %p44, %p45
      %p47 = scmp.ne.s32.totalorder %s36, %s37
      %p48 = scmp.eq.s32.totalorder %s16, 0
      %p49 = por %p47, %p48
      %p50 = scmp.ne.s32.totalorder %s36, %s37
      %p51 = scmp.eq.s32.totalorder %s17, 1
      %p52 = por %p50, %p51
      %p54 = scmp.ne.s32.totalorder %s37, %s53
      %p55 = scmp.eq.s32.totalorder %s17, 0
      %p56 = por %p54, %p55
      %s57 = ssub.s32 %s18, %s30
      %p58 = scmp.eq.s32.totalorder %s57, 0
      %s60 = sadd.s32 %s59, 1
      %s61 = scalar_select %p58, %s59, %s60
      %p64 = pneg %p58
      %p65 = scmp.eq.s32.totalorder %s11, 1
      %p66 = por %p64, %p65
      %p67 = scmp.ne.s32.totalorder %s59, %s62
      %p68 = scmp.eq.s32.totalorder %s11, 0
      %p69 = por %p67, %p68
      %p70 = scmp.ne.s32.totalorder %s59, %s62
      %p71 = scmp.eq.s32.totalorder %s16, 1
      %p72 = por %p70, %p71
      %p73 = scmp.ne.s32.totalorder %s62, %s63
      %p74 = scmp.eq.s32.totalorder %s16, 0
      %p75 = por %p73, %p74
      %p76 = scmp.ne.s32.totalorder %s62, %s63
      %p77 = scmp.eq.s32.totalorder %s17, 1
      %p78 = por %p76, %p77
      %p80 = scmp.ne.s32.totalorder %s63, %s79
      %p81 = scmp.eq.s32.totalorder %s17, 0
      %p82 = por %p80, %p81
      %s83 = ssub.s32 %s19, %s26
      %s84 = ssub.s32 %s18, %s30
      %s85 = sor.u32 %s83, %s84
      %p86 = scmp.eq.s32.totalorder %s85, 0
      %s88 = sadd.s32 %s87, 1
      %s89 = scalar_select %p86, %s87, %s88
      %p92 = pneg %p86
      %p93 = scmp.eq.s32.totalorder %s11, 1
      %p94 = por %p92, %p93
      %p95 = scmp.ne.s32.totalorder %s87, %s90
      %p96 = scmp.eq.s32.totalorder %s11, 0
      %p97 = por %p95, %p96
      %p98 = scmp.ne.s32.totalorder %s87, %s90
      %p99 = scmp.eq.s32.totalorder %s16, 1
      %p100 = por %p98, %p99
      %p101 = scmp.ne.s32.totalorder %s90, %s91
      %p102 = scmp.eq.s32.totalorder %s16, 0
      %p103 = por %p101, %p102
      %p104 = scmp.ne.s32.totalorder %s90, %s91
      %p105 = scmp.eq.s32.totalorder %s17, 1
      %p106 = por %p104, %p105
      %p108 = scmp.ne.s32.totalorder %s91, %s107
      %p109 = scmp.eq.s32.totalorder %s17, 0
      %p110 = por %p108, %p109
      %p111 = scmp.le.s32.totalorder 1, %s11
      %p112 = scmp.lt.s32.totalorder %s11, 3
      %p113 = pnand %p111, %p112
      %p114 = pneg %p113
      // Predicated region
      $region9: #{span_electra_generator_prediction_head.3} parent=5 // pred_check
        _
      $region10: #{span_electra_generator_prediction_head.3} parent=5 // pred_check_branch
        %116 = sbr.rel (%p113) target = $region12
      $region11: #{span_electra_generator_prediction_head.3} parent=5 // pred_region
        %s117 = ssub.s32 %s11, 1
        // Predicated region
        $region13: #{span_electra_generator_prediction_head.3} parent=11 // pred_check
          %p118 = pneg %p75
        $region14: #{span_electra_generator_prediction_head.3} parent=11 // pred_check_branch
          %120 = sbr.rel (%p118) target = $region16
        $region15: #{span_electra_generator_prediction_head.3} parent=11 // pred_region
          %p121 = scmp.lt.s32.totalorder %s20, 0
          %s122 = scalar_select %p121, %s20, 0
          %s123 = smul.addr %s122, 4
          %s124 = scalar_lea.vmem %s1, %s123
        $region16: #{span_electra_generator_prediction_head.3} parent=11 // pred_fallthru
          _
      $region12: #{span_electra_generator_prediction_head.3} parent=5 // pred_fallthru
        _
      %p125 = scmp.lt.s32.totalorder %s11, 2
      // Predicated region
      $region17: #{span_electra_generator_prediction_head.3} parent=5 // pred_check
        %p126 = pneg %p125
      $region18: #{span_electra_generator_prediction_head.3} parent=5 // pred_check_branch
        %128 = sbr.rel (%p126) target = $region20
      $region19: #{span_electra_generator_prediction_head.3} parent=5 // pred_region
        // Predicated region
        $region21: #{span_electra_generator_prediction_head.3} parent=19 // pred_check
          %p129 = pneg %p43
        $region22: #{span_electra_generator_prediction_head.3} parent=19 // pred_check_branch
          %131 = sbr.rel (%p129) target = $region24
        $region23: #{span_electra_generator_prediction_head.3} parent=19 // pred_region
          %s132 = smul.u32 2, %s19
          %p133 = scmp.lt.s32.totalorder %s132, 3
          %s134 = scalar_select %p133, %s132, 3
          %s135 = smul.addr %s134, 4
          %s136 = scalar_lea.vmem %s0, %s135
          %s137 = smul.u32 2, %s19
        $region24: #{span_electra_generator_prediction_head.3} parent=19 // pred_fallthru
          _
      $region20: #{span_electra_generator_prediction_head.3} parent=5 // pred_fallthru
        _
      %p138 = scmp.le.s32.totalorder 1, %s11
      %p139 = scmp.lt.s32.totalorder %s11, 3
      %p140 = pnand %p138, %p139
      %p141 = pneg %p140
      // Predicated region
      $region25: #{span_electra_generator_prediction_head.3} parent=5 // pred_check
        _
      $region26: #{span_electra_generator_prediction_head.3} parent=5 // pred_check_branch
        %143 = sbr.rel (%p140) target = $region28
      $region27: #{span_electra_generator_prediction_head.3} parent=5 // pred_region
        %s144 = ssub.s32 %s11, 1
        %s145 = smul.u32 2, %s21
        %p146 = scmp.lt.s32.totalorder %s145, 3
        %s147 = scalar_select %p146, %s145, 3
        %s148 = smul.addr %s147, 4
        %s149 = scalar_lea.vmem %s0, %s148
        %p150 = pneg %p49
        %p151 = pneg %p46
        %p152 = scmp.lt.s32.totalorder %s20, 0
        %s153 = scalar_select %p152, %s20, 0
        %s154 = smul.addr %s153, 4
        %s155 = scalar_lea.vmem %s1, %s154
        %p156 = pneg %p75
        %p157 = pneg %p72
        %p158 = pneg %p103
        %p159 = pneg %p100
        %s160 = sand.u32 %s90, 1
        %s161 = scalar_lea.sflag [#allocation3], %s160
        %s162 = sand.u32 %s90, 1
        %s163 = smul.addr %s162, 8
        %s164 = scalar_lea.vmem [#allocation2], %s163
        %s165 = smul.u32 2, %s21
        %p166 = scmp.lt.s32.totalorder %s165, 3
        %s167 = scalar_select %p166, %s165, 3
        %s168 = smul.addr %s167, 4
        %s169 = scalar_lea.vmem %s0, %s168
        %s170 = smul.u32 2, %s21
        %p171 = scmp.lt.s32.totalorder %s20, 0
        %s172 = scalar_select %p171, %s20, 0
        %s173 = smul.addr %s172, 4
        %s174 = scalar_lea.vmem %s1, %s173
        %s175 = smul.u32 2, %s21
        %v177 = vld [vmem:[%s169] sm:$0xf]
        %v178 = vld [vmem:[%s169 + $0x4] sm:$0xf]
        %v179 = vld [vmem:[%s174] sm:$0xf]
        %v180 = vld [vmem:[%s174 + $0x4] sm:$0xf]
        %v181 = vld [vmem:[%s174 + $0x8] sm:$0xf]
        %v182 = vld [vmem:[%s174 + $0xc] sm:$0xf]
        %v185 = vunpack.c.l.b16 %v177
        %v186 = vunpack.c.l.b16 %v178
        %v187 = vpack.c.b16 %v186, %v185
        %v192 = vunpack.c.l.b16 %v179
        %v193 = vunpack.c.l.b16 %v180
        %v194 = vunpack.c.l.b16 %v181
        %v195 = vunpack.c.l.b16 %v182
        %v196 = vpack.c.b16 %v193, %v192
        %v197 = vpack.c.b16 %v195, %v194
        %vm200 = vcmask 261120
        %v202 = vsel %vm200, %v187, 0
        %204 = vmatprep.subr.bf16.mxu0 0
        %205 = vmatpush1.bf16.msra.mxu0 %v196
        %206 = vmatprep.subr.bf16.mxu0 0
        %207 = vmatpush1.bf16.msra.mxu0 %v197
        %208 = vmatprep.subr.bf16.mxu0 0
        %209 = vmatpush1.bf16.msra.mxu0 0
        %210 = vmatprep.subr.bf16.mxu0 0
        %211 = vmatpush1.bf16.msra.mxu0 0
        %212 = vmatprep.subr.bf16.mxu0 0
        %213 = vmatpush1.bf16.msra.mxu0 0
        %214 = vmatprep.subr.bf16.mxu0 0
        %215 = vmatpush1.bf16.msra.mxu0 0
        %216 = vmatprep.subr.bf16.mxu0 0
        %217 = vmatpush1.bf16.msra.mxu0 0
        %218 = vmatprep.subr.bf16.mxu0 0
        %219 = vmatpush1.bf16.msra.mxu0 0
        %220 = vmatprep.subr.bf16.mxu0 0
        %221 = vmatpush1.bf16.msra.mxu0 0
        %222 = vmatprep.subr.bf16.mxu0 0
        %223 = vmatpush1.bf16.msra.mxu0 0
        %224 = vmatprep.subr.bf16.mxu0 0
        %225 = vmatpush1.bf16.msra.mxu0 0
        %226 = vmatprep.subr.bf16.mxu0 0
        %227 = vmatpush1.bf16.msra.mxu0 0
        %228 = vmatprep.subr.bf16.mxu0 0
        %229 = vmatpush1.bf16.msra.mxu0 0
        %230 = vmatprep.subr.bf16.mxu0 0
        %231 = vmatpush1.bf16.msra.mxu0 0
        %232 = vmatprep.subr.bf16.mxu0 0
        %233 = vmatpush1.bf16.msra.mxu0 0
        %234 = vmatprep.subr.bf16.mxu0 0
        %235 = vmatpush1.bf16.msra.mxu0 0
        %236 = vmatprep.mubr.bf16.mxu0 0
        %237 = vmatmul.mubr.bf16.gmra.mrb[0].mxu0 %v202
        %v238 = vpop.f32.mrb[0].mxu0
        %v239 = vadd.f32 0.0, %v238
        %v240 = vpop.f32.mrb[0].mxu0
        %v241 = vpop.f32.mrb[0].mxu0
        %v242 = vadd.f32 0.0, %v241
        %v243 = vpop.f32.mrb[0].mxu0
        %244 = vdwg.mxu0
        %v245 = vpack.c.bf16 %v242, %v239
        %v247 = vunpack.c.l.b16 %v245
        %v248 = vunpack.c.h.b16 %v245
        %v249 = vpack.c.b16 %v247, %v247
        %v250 = vpack.c.b16 %v248, %v248
        %253 = vst [vmem:[%s164] sm:$0xf] %v249
        %254 = vst [vmem:[%s164 + $0x4] sm:$0xf] %v250
        %s255 = sand.u32 %s90, 1
        %s256 = scalar_lea.sflag [#allocation3], %s255
        %s257 = sand.u32 %s90, 1
        %s258 = smul.addr %s257, 8
        %s259 = scalar_lea.vmem [#allocation2], %s258
        // Predicated region
        $region29: #{span_electra_generator_prediction_head.3} parent=27 // pred_check
          %p260 = pneg %p100
        $region30: #{span_electra_generator_prediction_head.3} parent=27 // pred_check_branch
          %262 = sbr.rel (%p260) target = $region32
        $region31: #{span_electra_generator_prediction_head.3} parent=27 // pred_region
          %s263 = smul.u32 2, %s21
          %s265 = ssub.s32 128, 128
          %266 = vsyncadd %s256, %s265
          %s267 = sadd.s32 %s20, %s263
          %s268 = smul.addr %s267, 64
          %s269 = scalar_lea.hbm %s2, %s268
          %s270 = sshll.u32 %s259, 4
          %s271 = int_to_ptr.vmem [resolvable:$true] %s270
          %276 = dma.vmem_to_hbm [thread:$0]  %s271, 128, %s269, %s256, 64, 64, 4
        $region32: #{span_electra_generator_prediction_head.3} parent=27 // pred_fallthru
          _
      $region28: #{span_electra_generator_prediction_head.3} parent=5 // pred_fallthru
        _
      %p277 = scmp.le.s32.totalorder 2, %s11
      // Predicated region
      $region33: #{span_electra_generator_prediction_head.3} parent=5 // pred_check
        %p278 = pneg %p277
      $region34: #{span_electra_generator_prediction_head.3} parent=5 // pred_check_branch
        %280 = sbr.rel (%p278) target = $region36
      $region35: #{span_electra_generator_prediction_head.3} parent=5 // pred_region
        %s281 = ssub.s32 %s11, 2
        // Predicated region
        $region37: #{span_electra_generator_prediction_head.3} parent=35 // pred_check
          %p282 = pneg %p106
        $region38: #{span_electra_generator_prediction_head.3} parent=35 // pred_check_branch
          %284 = sbr.rel (%p282) target = $region40
        $region39: #{span_electra_generator_prediction_head.3} parent=35 // pred_region
          %s285 = sand.u32 %s91, 1
          %s286 = scalar_lea.sflag [#allocation3], %s285
          %s287 = sand.u32 %s91, 1
          %s288 = smul.addr %s287, 8
          %s289 = scalar_lea.vmem [#allocation2], %s288
          %290 = dma.done %s286, 128
        $region40: #{span_electra_generator_prediction_head.3} parent=35 // pred_fallthru
          _
      $region36: #{span_electra_generator_prediction_head.3} parent=5 // pred_fallthru
        _
    $region6: #{span_electra_generator_prediction_head.3} parent=1 // loop_footer
      %s15 = sadd.s32 1, %s11
    $region7: #{span_electra_generator_prediction_head.3} parent=1 // loop_footer_branch
      %10 = sbr.rel target = $region3
    $region8: #{span_electra_generator_prediction_head.3} parent=1 // loop_exit
      _
    %291 = vsyncpa [#allocation3], 1
    %s292 = scalar_lea.sflag [#allocation3], 1
    %293 = vsyncpa %s292, 1

// kernel: span_electra_generator_prediction_head.2
$region0: #{span_electra_generator_prediction_head.2}
  #allocation0 [shape = 'u32[]', space=smem, size = 0x4, offset = 0x4, fixed_abs, tag = 'smem constant byte address 0x4 - core index']
  #allocation1 [shape = 'u32[144,128]{1,0:T(1,128)}', space=vmem, size = 0x12000, scoped, tag = 'internal scratch']
  %s0 = inlined_call_operand.vmem [shape: f32[32,128], index: 0, kind: input, shape index: {}]
  %s1 = inlined_call_operand.vmem [shape: f32[8,128], index: 1, kind: input, shape index: {}]
  %s2 = inlined_call_operand.vmem [shape: f32[8,32], index: 2, kind: input, shape index: {}]
  %s3 = inlined_call_operand.vmem [shape: bf16[128,128], index: 3, kind: input, shape index: {}]
  %s4 = inlined_call_operand.vmem [shape: bf16[128,32], index: 4, kind: input, shape index: {}]
  %s5 = inlined_call_operand.vmem [shape: bf16[32,32], index: 5, kind: output, shape index: {}]
  %s6 = sld [smem:[#allocation0]]
  $region53: #{span_electra_generator_prediction_head.2} parent=0
    _
  %s8 = ssub.s32 1, %s6
  %s9 = scalar_select 0, %s8, %s6
  loop: start=0, step=1, limit=4
  $region2: #{span_electra_generator_prediction_head.2} parent=0 // loop_pre_header
    _
  $region3: #{span_electra_generator_prediction_head.2} parent=0 // loop_header
    %s11 = sphi 0, %s15
    %p12 = scmp.ge.s32.totalorder %s11, 4
    %s21 = sphi 0, %s23
    %s24 = sphi 0, %s21
    %s25 = sphi 0, %s24
    %s41 = sphi 0, %s25
    %s45 = sphi 0, %s45
    %s47 = sphi 0, %s45
    %s48 = sphi 0, %s47
    %s62 = sphi 0, %s48
    %s66 = sphi 0, %s66
    %s68 = sphi 0, %s66
    %s69 = sphi 0, %s68
    %s83 = sphi 0, %s69
    %s87 = sphi 0, %s87
    %s89 = sphi 0, %s87
    %s90 = sphi 0, %s89
    %s104 = sphi 0, %s90
    %s108 = sphi 0, %s108
    %s110 = sphi 0, %s108
    %s111 = sphi 0, %s110
    %s125 = sphi 0, %s111
    %s131 = sphi 0, %s133
    %s134 = sphi 0, %s131
    %s135 = sphi 0, %s134
    %s151 = sphi 0, %s135
  $region4: #{span_electra_generator_prediction_head.2} parent=0 // loop_header_branch
    %14 = sbr.rel (%p12) target = $region8
  $region5: #{span_electra_generator_prediction_head.2} parent=0 // loop_body
    %s16 = ssub.s32 %s11, 1
    %s17 = ssub.s32 %s11, 2
    %s18 = sadd.s32 %s11, 1
    %s19 = ssub.s32 %s11, %s18
    %p20 = scmp.eq.s32.totalorder %s19, 0
    %s22 = sadd.s32 %s21, 1
    %s23 = scalar_select %p20, %s21, %s22
    %p26 = pneg %p20
    %p27 = scmp.eq.s32.totalorder %s11, 1
    %p28 = por %p26, %p27
    %p29 = scmp.ne.s32.totalorder %s21, %s24
    %p30 = scmp.eq.s32.totalorder %s11, 0
    %p31 = por %p29, %p30
    %p32 = scmp.ne.s32.totalorder %s21, %s24
    %p33 = scmp.eq.s32.totalorder %s16, 1
    %p34 = por %p32, %p33
    %p35 = scmp.ne.s32.totalorder %s24, %s25
    %p36 = scmp.eq.s32.totalorder %s16, 0
    %p37 = por %p35, %p36
    %p38 = scmp.ne.s32.totalorder %s24, %s25
    %p39 = scmp.eq.s32.totalorder %s17, 1
    %p40 = por %p38, %p39
    %p42 = scmp.ne.s32.totalorder %s25, %s41
    %p43 = scmp.eq.s32.totalorder %s17, 0
    %p44 = por %p42, %p43
    %s46 = sadd.s32 %s45, 1
    %p49 = scmp.eq.s32.totalorder %s11, 1
    %p50 = scmp.ne.s32.totalorder %s45, %s47
    %p51 = scmp.eq.s32.totalorder %s11, 0
    %p52 = por %p50, %p51
    %p53 = scmp.ne.s32.totalorder %s45, %s47
    %p54 = scmp.eq.s32.totalorder %s16, 1
    %p55 = por %p53, %p54
    %p56 = scmp.ne.s32.totalorder %s47, %s48
    %p57 = scmp.eq.s32.totalorder %s16, 0
    %p58 = por %p56, %p57
    %p59 = scmp.ne.s32.totalorder %s47, %s48
    %p60 = scmp.eq.s32.totalorder %s17, 1
    %p61 = por %p59, %p60
    %p63 = scmp.ne.s32.totalorder %s48, %s62
    %p64 = scmp.eq.s32.totalorder %s17, 0
    %p65 = por %p63, %p64
    %s67 = sadd.s32 %s66, 1
    %p70 = scmp.eq.s32.totalorder %s11, 1
    %p71 = scmp.ne.s32.totalorder %s66, %s68
    %p72 = scmp.eq.s32.totalorder %s11, 0
    %p73 = por %p71, %p72
    %p74 = scmp.ne.s32.totalorder %s66, %s68
    %p75 = scmp.eq.s32.totalorder %s16, 1
    %p76 = por %p74, %p75
    %p77 = scmp.ne.s32.totalorder %s68, %s69
    %p78 = scmp.eq.s32.totalorder %s16, 0
    %p79 = por %p77, %p78
    %p80 = scmp.ne.s32.totalorder %s68, %s69
    %p81 = scmp.eq.s32.totalorder %s17, 1
    %p82 = por %p80, %p81
    %p84 = scmp.ne.s32.totalorder %s69, %s83
    %p85 = scmp.eq.s32.totalorder %s17, 0
    %p86 = por %p84, %p85
    %s88 = sadd.s32 %s87, 1
    %p91 = scmp.eq.s32.totalorder %s11, 1
    %p92 = scmp.ne.s32.totalorder %s87, %s89
    %p93 = scmp.eq.s32.totalorder %s11, 0
    %p94 = por %p92, %p93
    %p95 = scmp.ne.s32.totalorder %s87, %s89
    %p96 = scmp.eq.s32.totalorder %s16, 1
    %p97 = por %p95, %p96
    %p98 = scmp.ne.s32.totalorder %s89, %s90
    %p99 = scmp.eq.s32.totalorder %s16, 0
    %p100 = por %p98, %p99
    %p101 = scmp.ne.s32.totalorder %s89, %s90
    %p102 = scmp.eq.s32.totalorder %s17, 1
    %p103 = por %p101, %p102
    %p105 = scmp.ne.s32.totalorder %s90, %s104
    %p106 = scmp.eq.s32.totalorder %s17, 0
    %p107 = por %p105, %p106
    %s109 = sadd.s32 %s108, 1
    %p112 = scmp.eq.s32.totalorder %s11, 1
    %p113 = scmp.ne.s32.totalorder %s108, %s110
    %p114 = scmp.eq.s32.totalorder %s11, 0
    %p115 = por %p113, %p114
    %p116 = scmp.ne.s32.totalorder %s108, %s110
    %p117 = scmp.eq.s32.totalorder %s16, 1
    %p118 = por %p116, %p117
    %p119 = scmp.ne.s32.totalorder %s110, %s111
    %p120 = scmp.eq.s32.totalorder %s16, 0
    %p121 = por %p119, %p120
    %p122 = scmp.ne.s32.totalorder %s110, %s111
    %p123 = scmp.eq.s32.totalorder %s17, 1
    %p124 = por %p122, %p123
    %p126 = scmp.ne.s32.totalorder %s111, %s125
    %p127 = scmp.eq.s32.totalorder %s17, 0
    %p128 = por %p126, %p127
    %s129 = ssub.s32 %s11, %s18
    %p130 = scmp.eq.s32.totalorder %s129, 0
    %s132 = sadd.s32 %s131, 1
    %s133 = scalar_select %p130, %s131, %s132
    %p136 = pneg %p130
    %p137 = scmp.eq.s32.totalorder %s11, 1
    %p138 = por %p136, %p137
    %p139 = scmp.ne.s32.totalorder %s131, %s134
    %p140 = scmp.eq.s32.totalorder %s11, 0
    %p141 = por %p139, %p140
    %p142 = scmp.ne.s32.totalorder %s131, %s134
    %p143 = scmp.eq.s32.totalorder %s16, 1
    %p144 = por %p142, %p143
    %p145 = scmp.ne.s32.totalorder %s134, %s135
    %p146 = scmp.eq.s32.totalorder %s16, 0
    %p147 = por %p145, %p146
    %p148 = scmp.ne.s32.totalorder %s134, %s135
    %p149 = scmp.eq.s32.totalorder %s17, 1
    %p150 = por %p148, %p149
    %p152 = scmp.ne.s32.totalorder %s135, %s151
    %p153 = scmp.eq.s32.totalorder %s17, 0
    %p154 = por %p152, %p153
    %p155 = scmp.le.s32.totalorder 1, %s11
    %p156 = scmp.lt.s32.totalorder %s11, 3
    %p157 = pnand %p155, %p156
    %p158 = pneg %p157
    // Predicated region
    $region9: #{span_electra_generator_prediction_head.2} parent=5 // pred_check
      _
    $region10: #{span_electra_generator_prediction_head.2} parent=5 // pred_check_branch
      %160 = sbr.rel (%p157) target = $region12
    $region11: #{span_electra_generator_prediction_head.2} parent=5 // pred_region
      %s161 = ssub.s32 %s11, 1
      // Predicated region
      $region13: #{span_electra_generator_prediction_head.2} parent=11 // pred_check
        %p162 = pneg %p58
      $region14: #{span_electra_generator_prediction_head.2} parent=11 // pred_check_branch
        %164 = sbr.rel (%p162) target = $region16
      $region15: #{span_electra_generator_prediction_head.2} parent=11 // pred_region
        _
      $region16: #{span_electra_generator_prediction_head.2} parent=11 // pred_fallthru
        _
      // Predicated region
      $region17: #{span_electra_generator_prediction_head.2} parent=11 // pred_check
        %p165 = pneg %p79
      $region18: #{span_electra_generator_prediction_head.2} parent=11 // pred_check_branch
        %167 = sbr.rel (%p165) target = $region20
      $region19: #{span_electra_generator_prediction_head.2} parent=11 // pred_region
        _
      $region20: #{span_electra_generator_prediction_head.2} parent=11 // pred_fallthru
        _
      // Predicated region
      $region21: #{span_electra_generator_prediction_head.2} parent=11 // pred_check
        %p168 = pneg %p100
      $region22: #{span_electra_generator_prediction_head.2} parent=11 // pred_check_branch
        %170 = sbr.rel (%p168) target = $region24
      $region23: #{span_electra_generator_prediction_head.2} parent=11 // pred_region
        _
      $region24: #{span_electra_generator_prediction_head.2} parent=11 // pred_fallthru
        _
      // Predicated region
      $region25: #{span_electra_generator_prediction_head.2} parent=11 // pred_check
        %p171 = pneg %p121
      $region26: #{span_electra_generator_prediction_head.2} parent=11 // pred_check_branch
        %173 = sbr.rel (%p171) target = $region28
      $region27: #{span_electra_generator_prediction_head.2} parent=11 // pred_region
        _
      $region28: #{span_electra_generator_prediction_head.2} parent=11 // pred_fallthru
        _
    $region12: #{span_electra_generator_prediction_head.2} parent=5 // pred_fallthru
      _
    %p174 = scmp.lt.s32.totalorder %s11, 2
    // Predicated region
    $region29: #{span_electra_generator_prediction_head.2} parent=5 // pred_check
      %p175 = pneg %p174
    $region30: #{span_electra_generator_prediction_head.2} parent=5 // pred_check_branch
      %177 = sbr.rel (%p175) target = $region32
    $region31: #{span_electra_generator_prediction_head.2} parent=5 // pred_region
      // Predicated region
      $region33: #{span_electra_generator_prediction_head.2} parent=31 // pred_check
        %p178 = pneg %p31
      $region34: #{span_electra_generator_prediction_head.2} parent=31 // pred_check_branch
        %180 = sbr.rel (%p178) target = $region36
      $region35: #{span_electra_generator_prediction_head.2} parent=31 // pred_region
        %s181 = smul.u32 2, %s11
        %p182 = scmp.lt.s32.totalorder %s181, 3
        %s183 = scalar_select %p182, %s181, 3
        %s184 = smul.addr %s183, 8
        %s185 = scalar_lea.vmem %s0, %s184
        %s186 = smul.u32 2, %s11
      $region36: #{span_electra_generator_prediction_head.2} parent=31 // pred_fallthru
        _
    $region32: #{span_electra_generator_prediction_head.2} parent=5 // pred_fallthru
      _
    %p187 = scmp.le.s32.totalorder 1, %s11
    %p188 = scmp.lt.s32.totalorder %s11, 3
    %p189 = pnand %p187, %p188
    %p190 = pneg %p189
    // Predicated region
    $region37: #{span_electra_generator_prediction_head.2} parent=5 // pred_check
      _
    $region38: #{span_electra_generator_prediction_head.2} parent=5 // pred_check_branch
      %192 = sbr.rel (%p189) target = $region40
    $region39: #{span_electra_generator_prediction_head.2} parent=5 // pred_region
      %s193 = ssub.s32 %s11, 1
      %s194 = smul.u32 2, %s16
      %p195 = scmp.lt.s32.totalorder %s194, 3
      %s196 = scalar_select %p195, %s194, 3
      %s197 = smul.addr %s196, 8
      %s198 = scalar_lea.vmem %s0, %s197
      %p199 = pneg %p37
      %p200 = pneg %p34
      %p201 = pneg %p58
      %p202 = pneg %p55
      %p203 = pneg %p79
      %p204 = pneg %p76
      %p205 = pneg %p100
      %p206 = pneg %p97
      %p207 = pneg %p121
      %p208 = pneg %p118
      %p209 = pneg %p147
      %p210 = pneg %p144
      %s211 = smul.u32 2, %s16
      %p212 = scmp.lt.s32.totalorder %s211, 3
      %s213 = scalar_select %p212, %s211, 3
      %s214 = smul.addr %s213, 4
      %s215 = scalar_lea.vmem %s5, %s214
      %s216 = smul.u32 2, %s16
      %p217 = scmp.lt.s32.totalorder %s216, 3
      %s218 = scalar_select %p217, %s216, 3
      %s219 = smul.addr %s218, 8
      %s220 = scalar_lea.vmem %s0, %s219
      %s221 = smul.u32 2, %s16
      %s222 = smul.u32 2, %s16
      %p223 = scmp.lt.s32.totalorder %s222, 3
      %s224 = scalar_select %p223, %s222, 3
      %s225 = smul.addr %s224, 4
      %s226 = scalar_lea.vmem %s5, %s225
      %s227 = smul.u32 2, %s16
      %v229 = vld [vmem:[%s220] sm:$0xff]
      %v230 = vld [vmem:[%s220 + $0x8] sm:$0xff]
      %v231 = vld [vmem:[%s1] sm:$0xff]
      %v232 = vld [vmem:[%s2] sm:$0xff]
      %v233 = vld [vmem:[%s3] sm:$0xf]
      %v234 = vld [vmem:[%s3 + $0x4] sm:$0xf]
      %v235 = vld [vmem:[%s3 + $0x8] sm:$0xf]
      %v236 = vld [vmem:[%s3 + $0xc] sm:$0xf]
      %v237 = vld [vmem:[%s3 + $0x10] sm:$0xf]
      %v238 = vld [vmem:[%s3 + $0x14] sm:$0xf]
      %v239 = vld [vmem:[%s3 + $0x18] sm:$0xf]
      %v240 = vld [vmem:[%s3 + $0x1c] sm:$0xf]
      %v241 = vld [vmem:[%s3 + $0x20] sm:$0xf]
      %v242 = vld [vmem:[%s3 + $0x24] sm:$0xf]
      %v243 = vld [vmem:[%s3 + $0x28] sm:$0xf]
      %v244 = vld [vmem:[%s3 + $0x2c] sm:$0xf]
      %v245 = vld [vmem:[%s3 + $0x30] sm:$0xf]
      %v246 = vld [vmem:[%s3 + $0x34] sm:$0xf]
      %v247 = vld [vmem:[%s3 + $0x38] sm:$0xf]
      %v248 = vld [vmem:[%s3 + $0x3c] sm:$0xf]
      %v249 = vld [vmem:[%s4] sm:$0xf]
      %v250 = vld [vmem:[%s4 + $0x4] sm:$0xf]
      %v251 = vld [vmem:[%s4 + $0x8] sm:$0xf]
      %v252 = vld [vmem:[%s4 + $0xc] sm:$0xf]
      %v253 = vld [vmem:[%s4 + $0x10] sm:$0xf]
      %v254 = vld [vmem:[%s4 + $0x14] sm:$0xf]
      %v255 = vld [vmem:[%s4 + $0x18] sm:$0xf]
      %v256 = vld [vmem:[%s4 + $0x1c] sm:$0xf]
      %v257 = vld [vmem:[%s4 + $0x20] sm:$0xf]
      %v258 = vld [vmem:[%s4 + $0x24] sm:$0xf]
      %v259 = vld [vmem:[%s4 + $0x28] sm:$0xf]
      %v260 = vld [vmem:[%s4 + $0x2c] sm:$0xf]
      %v261 = vld [vmem:[%s4 + $0x30] sm:$0xf]
      %v262 = vld [vmem:[%s4 + $0x34] sm:$0xf]
      %v263 = vld [vmem:[%s4 + $0x38] sm:$0xf]
      %v264 = vld [vmem:[%s4 + $0x3c] sm:$0xf]
      %v265 = vmul.f32 %v229, 0.5
      %v266 = vmul.f32 %v230, 0.5
      %v267 = vmul.f32 %v229, 0.70710677
      %v268 = vmul.f32 %v230, 0.70710677
      %v269 = verf.f32.pop %v267
      %v270 = verf.f32.pop %v268
      %v271 = vadd.f32 %v269, 1.0
      %v272 = vadd.f32 %v270, 1.0
      %v273 = vmul.f32 %v265, %v271
      %v274 = vmul.f32 %v266, %v272
      %275 = vadd.xlane.f32.xlu0 %v273
      %v276 = vpop.xlane.xlu0 %275
      %277 = vadd.xlane.f32.xlu0 %v274
      %v278 = vpop.xlane.xlu0 %277
      %v279 = vmul.f32 %v276, 0.03125
      %v280 = vmul.f32 %v278, 0.03125
      %v281 = vmul.f32 %v273, %v273
      %v282 = vmul.f32 %v274, %v274
      %283 = vadd.xlane.f32.xlu0 %v281
      %v284 = vpop.xlane.xlu0 %283
      %285 = vadd.xlane.f32.xlu0 %v282
      %v286 = vpop.xlane.xlu0 %285
      %v287 = vmul.f32 %v284, 0.03125
      %v288 = vmul.f32 %v286, 0.03125
      %v289 = vmul.f32 %v279, %v279
      %v290 = vmul.f32 %v280, %v280
      %v291 = vsub.f32 %v287, %v289
      %v292 = vsub.f32 %v288, %v290
      %v293 = vmax.f32 %v291, 0.0
      %v294 = vmax.f32 %v292, 0.0
      %v295 = vsub.f32 %v273, %v279
      %v296 = vsub.f32 %v274, %v280
      %v297 = vadd.f32 %v293, 1e-12
      %v298 = vadd.f32 %v294, 1e-12
      %v299 = vrsqrt.pop %v297
      %v300 = vrsqrt.pop %v298
      %v301 = vmul.f32 %v295, %v299
      %v302 = vmul.f32 %v296, %v300
      %v303 = vlaneseq
      %v304 = vshrl.u32 %v303, 7
      %v305 = vsub.s32 0, %v304
      %v306 = vrot.slane %v231, %v305
      %v307 = vmul.f32 %v301, %v306
      %v308 = vmul.f32 %v302, %v306
      %v309 = vlaneseq
      %v310 = vshrl.u32 %v309, 7
      %v311 = vsub.s32 1, %v310
      %v312 = vrot.slane %v231, %v311
      %v313 = vadd.f32 %v307, %v312
      %v314 = vadd.f32 %v308, %v312
      %v315 = vpack.c.bf16 %v314, %v313
      %v316 = vlaneseq
      %v317 = vshrl.u32 %v316, 7
      %v318 = vsub.s32 2, %v317
      %v319 = vrot.slane %v231, %v318
      %v336 = vunpack.c.l.b16 %v233
      %v337 = vunpack.c.l.b16 %v234
      %v338 = vunpack.c.l.b16 %v235
      %v339 = vunpack.c.l.b16 %v236
      %v340 = vunpack.c.l.b16 %v237
      %v341 = vunpack.c.l.b16 %v238
      %v342 = vunpack.c.l.b16 %v239
      %v343 = vunpack.c.l.b16 %v240
      %v344 = vunpack.c.l.b16 %v241
      %v345 = vunpack.c.l.b16 %v242
      %v346 = vunpack.c.l.b16 %v243
      %v347 = vunpack.c.l.b16 %v244
      %v348 = vunpack.c.l.b16 %v245
      %v349 = vunpack.c.l.b16 %v246
      %v350 = vunpack.c.l.b16 %v247
      %v351 = vunpack.c.l.b16 %v248
      %v352 = vpack.c.b16 %v337, %v336
      %v353 = vpack.c.b16 %v339, %v338
      %v354 = vpack.c.b16 %v341, %v340
      %v355 = vpack.c.b16 %v343, %v342
      %v356 = vpack.c.b16 %v345, %v344
      %v357 = vpack.c.b16 %v347, %v346
      %v358 = vpack.c.b16 %v349, %v348
      %v359 = vpack.c.b16 %v351, %v350
      %368 = vmatprep.subr.bf16.mxu0 0
      %369 = vmatpush1.bf16.msra.mxu0 %v352
      %370 = vmatprep.subr.bf16.mxu0 0
      %371 = vmatpush1.bf16.msra.mxu0 %v353
      %372 = vmatprep.subr.bf16.mxu0 0
      %373 = vmatpush1.bf16.msra.mxu0 %v354
      %374 = vmatprep.subr.bf16.mxu0 0
      %375 = vmatpush1.bf16.msra.mxu0 %v355
      %376 = vmatprep.subr.bf16.mxu0 0
      %377 = vmatpush1.bf16.msra.mxu0 %v356
      %378 = vmatprep.subr.bf16.mxu0 0
      %379 = vmatpush1.bf16.msra.mxu0 %v357
      %380 = vmatprep.subr.bf16.mxu0 0
      %381 = vmatpush1.bf16.msra.mxu0 %v358
      %382 = vmatprep.subr.bf16.mxu0 0
      %383 = vmatpush1.bf16.msra.mxu0 %v359
      %384 = vmatprep.subr.bf16.mxu0 0
      %385 = vmatpush1.bf16.msra.mxu0 0
      %386 = vmatprep.subr.bf16.mxu0 0
      %387 = vmatpush1.bf16.msra.mxu0 0
      %388 = vmatprep.subr.bf16.mxu0 0
      %389 = vmatpush1.bf16.msra.mxu0 0
      %390 = vmatprep.subr.bf16.mxu0 0
      %391 = vmatpush1.bf16.msra.mxu0 0
      %392 = vmatprep.subr.bf16.mxu0 0
      %393 = vmatpush1.bf16.msra.mxu0 0
      %394 = vmatprep.subr.bf16.mxu0 0
      %395 = vmatpush1.bf16.msra.mxu0 0
      %396 = vmatprep.subr.bf16.mxu0 0
      %397 = vmatpush1.bf16.msra.mxu0 0
      %398 = vmatprep.subr.bf16.mxu0 0
      %399 = vmatpush1.bf16.msra.mxu0 0
      %400 = vmatprep.mubr.bf16.mxu0 0
      %401 = vmatmul.mubr.bf16.gmra.mrb[0].mxu0 %v315
      %v402 = vpop.f32.mrb[0].mxu0
      %v403 = vadd.f32 %v319, %v402
      %v404 = vpop.f32.mrb[0].mxu0
      %v405 = vpop.f32.mrb[0].mxu0
      %v406 = vadd.f32 %v319, %v405
      %v407 = vpop.f32.mrb[0].mxu0
      %408 = vdwg.mxu0
      %v409 = vmul.f32 %v403, 0.5
      %v410 = vmul.f32 %v406, 0.5
      %v411 = vmul.f32 %v403, 0.70710677
      %v412 = vmul.f32 %v406, 0.70710677
      %v413 = verf.f32.pop %v411
      %v414 = verf.f32.pop %v412
      %v415 = vadd.f32 %v413, 1.0
      %v416 = vadd.f32 %v414, 1.0
      %v417 = vmul.f32 %v409, %v415
      %v418 = vmul.f32 %v410, %v416
      %419 = vadd.xlane.f32.xlu0 %v417
      %v420 = vpop.xlane.xlu0 %419
      %421 = vadd.xlane.f32.xlu0 %v418
      %v422 = vpop.xlane.xlu0 %421
      %v423 = vmul.f32 %v420, 0.03125
      %v424 = vmul.f32 %v422, 0.03125
      %v425 = vmul.f32 %v417, %v417
      %v426 = vmul.f32 %v418, %v418
      %427 = vadd.xlane.f32.xlu0 %v425
      %v428 = vpop.xlane.xlu0 %427
      %429 = vadd.xlane.f32.xlu0 %v426
      %v430 = vpop.xlane.xlu0 %429
      %v431 = vmul.f32 %v428, 0.03125
      %v432 = vmul.f32 %v430, 0.03125
      %v433 = vmul.f32 %v423, %v423
      %v434 = vmul.f32 %v424, %v424
      %v435 = vsub.f32 %v431, %v433
      %v436 = vsub.f32 %v432, %v434
      %v437 = vmax.f32 %v435, 0.0
      %v438 = vmax.f32 %v436, 0.0
      %v439 = vsub.f32 %v417, %v423
      %v440 = vsub.f32 %v418, %v424
      %v441 = vadd.f32 %v437, 1e-12
      %v442 = vadd.f32 %v438, 1e-12
      %v443 = vrsqrt.pop %v441
      %v444 = vrsqrt.pop %v442
      %v445 = vmul.f32 %v439, %v443
      %v446 = vmul.f32 %v440, %v444
      %v447 = vlaneseq
      %v448 = vshrl.u32 %v447, 7
      %v449 = vsub.s32 3, %v448
      %v450 = vrot.slane %v231, %v449
      %v451 = vmul.f32 %v445, %v450
      %v452 = vmul.f32 %v446, %v450
      %v453 = vlaneseq
      %v454 = vshrl.u32 %v453, 7
      %v455 = vsub.s32 4, %v454
      %v456 = vrot.slane %v231, %v455
      %v457 = vadd.f32 %v451, %v456
      %v458 = vadd.f32 %v452, %v456
      %v459 = vpack.c.bf16 %v458, %v457
      %v460 = vlaneseq
      %v461 = vshrl.u32 %v460, 7
      %v462 = vsub.s32 0, %v461
      %v463 = vrot.slane %v232, %v462
      %v480 = vunpack.c.l.b16 %v249
      %v481 = vunpack.c.l.b16 %v250
      %v482 = vunpack.c.l.b16 %v251
      %v483 = vunpack.c.l.b16 %v252
      %v484 = vunpack.c.l.b16 %v253
      %v485 = vunpack.c.l.b16 %v254
      %v486 = vunpack.c.l.b16 %v255
      %v487 = vunpack.c.l.b16 %v256
      %v488 = vunpack.c.l.b16 %v257
      %v489 = vunpack.c.l.b16 %v258
      %v490 = vunpack.c.l.b16 %v259
      %v491 = vunpack.c.l.b16 %v260
      %v492 = vunpack.c.l.b16 %v261
      %v493 = vunpack.c.l.b16 %v262
      %v494 = vunpack.c.l.b16 %v263
      %v495 = vunpack.c.l.b16 %v264
      %v496 = vpack.c.b16 %v481, %v480
      %v497 = vpack.c.b16 %v483, %v482
      %v498 = vpack.c.b16 %v485, %v484
      %v499 = vpack.c.b16 %v487, %v486
      %v500 = vpack.c.b16 %v489, %v488
      %v501 = vpack.c.b16 %v491, %v490
      %v502 = vpack.c.b16 %v493, %v492
      %v503 = vpack.c.b16 %v495, %v494
      %512 = vmatprep.subr.bf16.mxu0 0
      %513 = vmatpush1.bf16.msra.mxu0 %v496
      %514 = vmatprep.subr.bf16.mxu0 0
      %515 = vmatpush1.bf16.msra.mxu0 %v497
      %516 = vmatprep.subr.bf16.mxu0 0
      %517 = vmatpush1.bf16.msra.mxu0 %v498
      %518 = vmatprep.subr.bf16.mxu0 0
      %519 = vmatpush1.bf16.msra.mxu0 %v499
      %520 = vmatprep.subr.bf16.mxu0 0
      %521 = vmatpush1.bf16.msra.mxu0 %v500
      %522 = vmatprep.subr.bf16.mxu0 0
      %523 = vmatpush1.bf16.msra.mxu0 %v501
      %524 = vmatprep.subr.bf16.mxu0 0
      %525 = vmatpush1.bf16.msra.mxu0 %v502
      %526 = vmatprep.subr.bf16.mxu0 0
      %527 = vmatpush1.bf16.msra.mxu0 %v503
      %528 = vmatprep.subr.bf16.mxu0 0
      %529 = vmatpush1.bf16.msra.mxu0 0
      %530 = vmatprep.subr.bf16.mxu0 0
      %531 = vmatpush1.bf16.msra.mxu0 0
      %532 = vmatprep.subr.bf16.mxu0 0
      %533 = vmatpush1.bf16.msra.mxu0 0
      %534 = vmatprep.subr.bf16.mxu0 0
      %535 = vmatpush1.bf16.msra.mxu0 0
      %536 = vmatprep.subr.bf16.mxu0 0
      %537 = vmatpush1.bf16.msra.mxu0 0
      %538 = vmatprep.subr.bf16.mxu0 0
      %539 = vmatpush1.bf16.msra.mxu0 0
      %540 = vmatprep.subr.bf16.mxu0 0
      %541 = vmatpush1.bf16.msra.mxu0 0
      %542 = vmatprep.subr.bf16.mxu0 0
      %543 = vmatpush1.bf16.msra.mxu0 0
      %544 = vmatprep.mubr.bf16.mxu0 0
      %545 = vmatmul.mubr.bf16.gmra.mrb[0].mxu0 %v459
      %v546 = vpop.f32.mrb[0].mxu0
      %v547 = vadd.f32 %v463, %v546
      %v548 = vpop.f32.mrb[0].mxu0
      %v549 = vpop.f32.mrb[0].mxu0
      %v550 = vadd.f32 %v463, %v549
      %v551 = vpop.f32.mrb[0].mxu0
      %552 = vdwg.mxu0
      %v553 = vpack.c.bf16 %v550, %v547
      %v555 = vunpack.c.l.b16 %v553
      %v556 = vunpack.c.h.b16 %v553
      %v557 = vpack.c.b16 %v555, %v555
      %v558 = vpack.c.b16 %v556, %v556
      %vm561 = vcmask 257024
      %562 = vst.msk [vmem:[%s226] sm:$0xf] %vm561, %v557
      %563 = vst.msk [vmem:[%s226 + $0x4] sm:$0xf] %vm561, %v558
      %s564 = smul.u32 2, %s16
      %p565 = scmp.lt.s32.totalorder %s564, 3
      %s566 = scalar_select %p565, %s564, 3
      %s567 = smul.addr %s566, 4
      %s568 = scalar_lea.vmem %s5, %s567
      // Predicated region
      $region41: #{span_electra_generator_prediction_head.2} parent=39 // pred_check
        %p569 = pneg %p144
      $region42: #{span_electra_generator_prediction_head.2} parent=39 // pred_check_branch
        %571 = sbr.rel (%p569) target = $region44
      $region43: #{span_electra_generator_prediction_head.2} parent=39 // pred_region
        %s572 = smul.u32 2, %s16
      $region44: #{span_electra_generator_prediction_head.2} parent=39 // pred_fallthru
        _
    $region40: #{span_electra_generator_prediction_head.2} parent=5 // pred_fallthru
      _
    %p573 = scmp.le.s32.totalorder 2, %s11
    // Predicated region
    $region45: #{span_electra_generator_prediction_head.2} parent=5 // pred_check
      %p574 = pneg %p573
    $region46: #{span_electra_generator_prediction_head.2} parent=5 // pred_check_branch
      %576 = sbr.rel (%p574) target = $region48
    $region47: #{span_electra_generator_prediction_head.2} parent=5 // pred_region
      %s577 = ssub.s32 %s11, 2
      // Predicated region
      $region49: #{span_electra_generator_prediction_head.2} parent=47 // pred_check
        %p578 = pneg %p150
      $region50: #{span_electra_generator_prediction_head.2} parent=47 // pred_check_branch
        %580 = sbr.rel (%p578) target = $region52
      $region51: #{span_electra_generator_prediction_head.2} parent=47 // pred_region
        %s581 = smul.u32 2, %s17
        %p582 = scmp.lt.s32.totalorder %s581, 3
        %s583 = scalar_select %p582, %s581, 3
        %s584 = smul.addr %s583, 4
        %s585 = scalar_lea.vmem %s5, %s584
      $region52: #{span_electra_generator_prediction_head.2} parent=47 // pred_fallthru
        _
    $region48: #{span_electra_generator_prediction_head.2} parent=5 // pred_fallthru
      _
  $region6: #{span_electra_generator_prediction_head.2} parent=0 // loop_footer
    %s15 = sadd.s32 1, %s11
  $region7: #{span_electra_generator_prediction_head.2} parent=0 // loop_footer_branch
    %10 = sbr.rel target = $region3
  $region8: #{span_electra_generator_prediction_head.2} parent=0 // loop_exit
    _

</llo_original>
